<compile_context>
chip_gen: v7x
topology: tpu7x:2x2x1
jax: 0.10.0
libtpu: 0.0.40
codegen_flags: <defaults>
</compile_context>

<pallas_src>
import functools

import jax
import jax.numpy as jnp
from jax import lax
from jax.experimental import pallas as pl
from jax.experimental.pallas import tpu as pltpu


def _blur_kernel(x_ref, dj_ref, di_ref, o_ref, *, W, compute_dtype):
    """Separable [1,2,1]x[1,2,1]/16 blur on a flat (T, N=H*W) block.

    x_ref  : (T, N) input block, lane-dense (N = H*W).
    dj_ref : (1, N) blend row: +1 where col==0, -1 where col==W-1, else 0.
    di_ref : (1, N) blend row: +1 where row==0, -1 where row==H-1, else 0.
    o_ref  : (T, N) output block.
    """
    N = x_ref.shape[-1]
    x = x_ref[...].astype(compute_dtype)
    dj = dj_ref[...]                              # (1, N), compute_dtype
    di = di_ref[...]                              # (1, N), compute_dtype

    # ---- horizontal [1, 2, 1] pass, reflect at j == 0 / j == W-1 -----------
    # Neighbors via cyclic lane rotations (XLU); the wrap / cross-row lanes are
    # exactly the boundary lanes, which the dj blend replaces:
    #   interior: left + right + 2x
    #   j == 0  : 2*right + 2x   (reflect: x[i,-1] -> x[i,1])
    #   j == W-1: 2*left  + 2x   (reflect: x[i,W]  -> x[i,W-2])
    left = pltpu.roll(x, shift=1, axis=1)         # x[q-1]
    right = pltpu.roll(x, shift=N - 1, axis=1)    # x[q+1]
    h = (left + right) + dj * (right - left) + 2.0 * x

    # ---- vertical [1, 2, 1] pass, reflect at i == 0 / i == H-1 -------------
    up = pltpu.roll(h, shift=W, axis=1)           # h[i-1, j]
    down = pltpu.roll(h, shift=N - W, axis=1)     # h[i+1, j]
    v = (up + down) + di * (down - up) + 2.0 * h
    o_ref[...] = (v * (1.0 / 16.0)).astype(o_ref.dtype)


def _pick_tile_bc(BC, row_bytes, target_block_bytes):
    """Rows per block: multiple of 8, divides BC when possible, ~target bytes,
    and >= 2 grid steps when possible (so v7x's two TensorCores both work)."""
    if BC <= 8:
        return BC
    max_rows = max(8, (target_block_bytes // row_bytes) // 8 * 8)
    if BC % 8 != 0:
        # Awkward BC: single resident block if small, else 8-row tiles
        # (rows are independent; Pallas masks the partial last block).
        return BC if BC * row_bytes <= target_block_bytes else 8
    cap = max(8, min(max_rows, BC // 2))
    t = (cap // 8) * 8
    while t >= 8:
        if BC % t == 0:
            return t
        t -= 8
    return 8


def blur(x, *, target_block_bytes=2 << 20, compute_dtype=None):
    """Blur forward pass. x: (B, C, H, W) float array (H, W >= 2)."""
    B, C, H, W = x.shape
    assert H >= 2 and W >= 2, "reflect padding requires H >= 2 and W >= 2"
    BC, N = B * C, H * W

    if compute_dtype is None:
        # bf16-native VPUs on v6e/v7x: keep bf16 inputs in bf16.
        # On v5e (no bf16 VALU) pass compute_dtype=jnp.float32 for bf16 inputs.
        compute_dtype = jnp.bfloat16 if x.dtype == jnp.bfloat16 else jnp.float32

    x2 = x.reshape(BC, N)                                    # free reshape

    # Precomputed reflect-boundary blend rows (resident in VMEM across grid).
    flat = jnp.arange(N, dtype=jnp.int32)
    col, row = flat % W, flat // W
    dj = ((col == 0).astype(compute_dtype)
          - (col == W - 1).astype(compute_dtype)).reshape(1, N)
    di = ((row == 0).astype(compute_dtype)
          - (row == H - 1).astype(compute_dtype)).reshape(1, N)

    itemsize_io = x.dtype.itemsize
    itemsize_c = jnp.dtype(compute_dtype).itemsize
    row_bytes = N * max(itemsize_io, itemsize_c)
    tile_bc = _pick_tile_bc(BC, row_bytes, target_block_bytes)
    grid = (pl.cdiv(BC, tile_bc),)

    # Scoped-VMEM request from the actual footprint: double-buffered in + out
    # blocks plus headroom for the compute-dtype temporaries, clamped to what
    # is safe on v7x (64 MiB physical per TensorCore).
    blk_io = tile_bc * N * itemsize_io
    blk_c = tile_bc * N * itemsize_c
    vmem_limit = int(min(64 << 20,
                         max(16 << 20, 4 * blk_io + 6 * blk_c + (2 << 20))))

    # TODO(synk): for very large H*W (e.g. 512x512 maps) also tile along N
    #   (block width a multiple of W and 128, recomputing the 1-row overlap)
    #   instead of always taking full H*W rows per block.
    # TODO(synk): for tiny levels (H*W < 128: 8x8, 4x4) pack several (B, C)
    #   images along the lane axis so output stores stay lane-dense.

    kernel = functools.partial(_blur_kernel, W=W, compute_dtype=compute_dtype)
    out = pl.pallas_call(
        kernel,
        out_shape=jax.ShapeDtypeStruct((BC, N), x.dtype),
        grid=grid,
        in_specs=[
            pl.BlockSpec((tile_bc, N), lambda i: (i, 0)),
            pl.BlockSpec((1, N), lambda i: (0, 0)),          # resident blend row
            pl.BlockSpec((1, N), lambda i: (0, 0)),          # resident blend row
        ],
        out_specs=pl.BlockSpec((tile_bc, N), lambda i: (i, 0)),
        compiler_params=pltpu.CompilerParams(
            dimension_semantics=("parallel",),               # megacore on v7x
            vmem_limit_bytes=vmem_limit,
        ),
        cost_estimate=pl.CostEstimate(
            flops=14 * BC * N,
            transcendentals=0,
            bytes_accessed=2 * BC * N * itemsize_io,
        ),
    )(x2, dj, di)
    return out.reshape(B, C, H, W)


def _blur_reference(x):
    """Pure-JAX reference: depthwise 3x3 conv on reflect-padded input."""
    B, C, H, W = x.shape
    f = jnp.array([1.0, 2.0, 1.0], jnp.float32)
    k = (f[None, :] * f[:, None]) / 16.0                    # (3, 3), normalized
    k = jnp.broadcast_to(k[None, None], (C, 1, 3, 3))       # depthwise
    xp = jnp.pad(x, ((0, 0), (0, 0), (1, 1), (1, 1)), mode="reflect")
    return lax.conv_general_dilated(
        xp.astype(jnp.float32), k,
        window_strides=(1, 1), padding="VALID",
        dimension_numbers=("NCHW", "OIHW", "NCHW"),
        feature_group_count=C).astype(x.dtype)


if __name__ == "__main__":
    key = jax.random.PRNGKey(0)
    B, C, H, W = 2, 4, 16, 16
    x = jax.random.normal(key, (B, C, H, W), dtype=jnp.float32)

    y = jax.jit(blur)(x)
    jax.block_until_ready(y)

    y_ref = _blur_reference(x)
    assert y.shape == (B, C, H, W)
    assert jnp.allclose(y, y_ref, atol=1e-5, rtol=1e-5), \
        float(jnp.max(jnp.abs(y - y_ref)))

    # Secondary check: multi-step grid (2 blocks) + sub-128 lane width (8x8 maps).
    x_small = jax.random.normal(jax.random.PRNGKey(1), (1, 16, 8, 8), jnp.float32)
    y_small = jax.jit(blur)(x_small)
    jax.block_until_ready(y_small)
    assert jnp.allclose(y_small, _blur_reference(x_small), atol=1e-5, rtol=1e-5), \
        float(jnp.max(jnp.abs(y_small - _blur_reference(x_small))))

    print("KERNEL_OK")
</pallas_src>

<mosaic_0001>
module attributes {stable_mosaic.version = 11 : i64} {
  func.func @_blur_kernel(%arg0: i32, %arg1: memref<8x256xf32, #tpu.memory_space<vmem>>, %arg2: memref<1x256xf32, #tpu.memory_space<vmem>>, %arg3: memref<1x256xf32, #tpu.memory_space<vmem>>, %arg4: memref<8x256xf32, #tpu.memory_space<vmem>>) attributes {dimension_semantics = [#tpu.dimension_semantics<parallel>], iteration_bounds = array<i64: 1>, scalar_prefetch = 0 : i64, scratch_operands = 0 : i64, tpu.core_type = #tpu.core_type<tc>, window_params = [{transform_indices = @transform_0, window_bounds = array<i64: 8, 256>}, {pipeline_mode = #tpu.pipeline_mode<synchronous>, transform_indices = @transform_1, window_bounds = array<i64: 1, 256>}, {pipeline_mode = #tpu.pipeline_mode<synchronous>, transform_indices = @transform_2, window_bounds = array<i64: 1, 256>}, {transform_indices = @transform_3, window_bounds = array<i64: 8, 256>}]} {
    %c0 = arith.constant 0 : index
    %c0_0 = arith.constant 0 : index
    %0 = vector.load %arg1[%c0, %c0_0] : memref<8x256xf32, #tpu.memory_space<vmem>>, vector<8x256xf32>
    %c0_1 = arith.constant 0 : index
    %c0_2 = arith.constant 0 : index
    %1 = vector.load %arg2[%c0_1, %c0_2] : memref<1x256xf32, #tpu.memory_space<vmem>>, vector<1x256xf32>
    %c0_3 = arith.constant 0 : index
    %c0_4 = arith.constant 0 : index
    %2 = vector.load %arg3[%c0_3, %c0_4] : memref<1x256xf32, #tpu.memory_space<vmem>>, vector<1x256xf32>
    %c1_i32 = arith.constant 1 : i32
    %3 = tpu.dynamic_rotate %0 by %c1_i32 dim 1 : vector<8x256xf32>, i32 -> vector<8x256xf32>
    %c255_i32 = arith.constant 255 : i32
    %4 = tpu.dynamic_rotate %0 by %c255_i32 dim 1 : vector<8x256xf32>, i32 -> vector<8x256xf32>
    %5 = arith.addf %3, %4 : vector<8x256xf32>
    %6 = arith.subf %4, %3 : vector<8x256xf32>
    %7 = vector.broadcast %1 : vector<1x256xf32> to vector<8x256xf32>
    %8 = arith.mulf %7, %6 : vector<8x256xf32>
    %9 = arith.addf %5, %8 : vector<8x256xf32>
    %cst = arith.constant 2.000000e+00 : f32
    %10 = vector.broadcast %cst : f32 to vector<8x256xf32>
    %11 = arith.mulf %10, %0 : vector<8x256xf32>
    %12 = arith.addf %9, %11 : vector<8x256xf32>
    %c16_i32 = arith.constant 16 : i32
    %13 = tpu.dynamic_rotate %12 by %c16_i32 dim 1 : vector<8x256xf32>, i32 -> vector<8x256xf32>
    %c240_i32 = arith.constant 240 : i32
    %14 = tpu.dynamic_rotate %12 by %c240_i32 dim 1 : vector<8x256xf32>, i32 -> vector<8x256xf32>
    %15 = arith.addf %13, %14 : vector<8x256xf32>
    %16 = arith.subf %14, %13 : vector<8x256xf32>
    %17 = vector.broadcast %2 : vector<1x256xf32> to vector<8x256xf32>
    %18 = arith.mulf %17, %16 : vector<8x256xf32>
    %19 = arith.addf %15, %18 : vector<8x256xf32>
    %cst_5 = arith.constant 2.000000e+00 : f32
    %20 = vector.broadcast %cst_5 : f32 to vector<8x256xf32>
    %21 = arith.mulf %20, %12 : vector<8x256xf32>
    %22 = arith.addf %19, %21 : vector<8x256xf32>
    %cst_6 = arith.constant 6.250000e-02 : f32
    %23 = vector.broadcast %cst_6 : f32 to vector<8x256xf32>
    %24 = arith.mulf %22, %23 : vector<8x256xf32>
    %c0_7 = arith.constant 0 : index
    %c0_8 = arith.constant 0 : index
    %25 = vector.load %arg4[%c0_7, %c0_8] : memref<8x256xf32, #tpu.memory_space<vmem>>, vector<8x256xf32>
    tpu.vector_store %arg4[%c0_7, %c0_8], %24 {strides = array<i32>} : memref<8x256xf32, #tpu.memory_space<vmem>>, vector<8x256xf32>,
    return
  }
  func.func @transform_0(%arg0: i32) -> (i32, i32) {
    %c0_i32 = arith.constant 0 : i32
    %c0_i32_0 = arith.constant 0 : i32
    return %arg0, %c0_i32 : i32, i32
  }
  func.func @transform_1(%arg0: i32) -> (i32, i32) {
    %c0_i32 = arith.constant 0 : i32
    %c0_i32_0 = arith.constant 0 : i32
    %c0_i32_1 = arith.constant 0 : i32
    return %c0_i32, %c0_i32_0 : i32, i32
  }
  func.func @transform_2(%arg0: i32) -> (i32, i32) {
    %c0_i32 = arith.constant 0 : i32
    %c0_i32_0 = arith.constant 0 : i32
    %c0_i32_1 = arith.constant 0 : i32
    return %c0_i32, %c0_i32_0 : i32, i32
  }
  func.func @transform_3(%arg0: i32) -> (i32, i32) {
    %c0_i32 = arith.constant 0 : i32
    %c0_i32_0 = arith.constant 0 : i32
    return %arg0, %c0_i32 : i32, i32
  }
}

</mosaic_0001>

<llo_original>
// kernel: blur.1
$region0: #{blur.1}
  #allocation0 [shape = 'u32[]', space=smem, size = 0x4, offset = 0x4, fixed_abs, tag = 'smem constant byte address 0x4 - core index']
  #allocation1 [shape = 'u32[144,128]{1,0:T(1,128)}', space=vmem, size = 0x12000, scoped, tag = 'internal scratch']
  %s0 = inlined_call_operand.vmem [shape: f32[8,256], index: 0, kind: input, shape index: {}]
  %s1 = inlined_call_operand.vmem [shape: f32[1,256], index: 1, kind: input, shape index: {}]
  %s2 = inlined_call_operand.vmem [shape: f32[1,256], index: 2, kind: input, shape index: {}]
  %s3 = inlined_call_operand.vmem [shape: f32[8,256], index: 3, kind: output, shape index: {}]
  %s4 = sld [smem:[#allocation0]]
  $region22: #{blur.1} parent=0
    _
  %s6 = ssub.s32 1, %s4
  %s7 = scalar_select 0, %s6, %s4
  // Predicated region
  $region2: #{blur.1} parent=0 // pred_check
    _
  $region3: #{blur.1} parent=0 // pred_check_branch
    %9 = sbr.rel (0) target = $region5
  $region4: #{blur.1} parent=0 // pred_region
    _
  $region5: #{blur.1} parent=0 // pred_fallthru
    _
  // Predicated region
  $region6: #{blur.1} parent=0 // pred_check
    _
  $region7: #{blur.1} parent=0 // pred_check_branch
    %11 = sbr.rel (0) target = $region9
  $region8: #{blur.1} parent=0 // pred_region
    _
  $region9: #{blur.1} parent=0 // pred_fallthru
    _
  // Predicated region
  $region10: #{blur.1} parent=0 // pred_check
    _
  $region11: #{blur.1} parent=0 // pred_check_branch
    %13 = sbr.rel (0) target = $region13
  $region12: #{blur.1} parent=0 // pred_region
    _
  $region13: #{blur.1} parent=0 // pred_fallthru
    _
  %v14 = vld [vmem:[%s0] sm:$0xff]
  %v15 = vld [vmem:[%s0 + $0x8] sm:$0xff]
  %v16 = vld [vmem:[%s1] sm:$0x3]
  %v17 = vld [vmem:[%s2] sm:$0x3]
  %18 = vrot.lane.b32.xlu0 %v14, 1
  %v19 = vpop.permute.xlu0 %18
  %20 = vrot.lane.b32.xlu0 %v15, 1
  %v21 = vpop.permute.xlu0 %20
  %v22 = vlaneseq
  %v23 = vand.u32 %v22, 127
  %vm24 = vcmp.lt.s32.totalorder %v23, 1
  %v25 = vsel %vm24, %v19, %v21
  %v26 = vsel %vm24, %v21, %v19
  %27 = vrot.lane.b32.xlu0 %v14, 127
  %v28 = vpop.permute.xlu0 %27
  %29 = vrot.lane.b32.xlu0 %v15, 127
  %v30 = vpop.permute.xlu0 %29
  %vm31 = vcmp.lt.s32.totalorder %v23, 127
  %v32 = vsel %vm31, %v28, %v30
  %v33 = vsel %vm31, %v30, %v28
  %v34 = vadd.f32 %v26, %v32
  %v35 = vadd.f32 %v25, %v33
  %v36 = vsub.f32 %v32, %v26
  %v37 = vsub.f32 %v33, %v25
  %v39 = vlaneseq
  %v40 = vshrl.u32 %v39, 7
  %v41 = vsub.s32 0, %v40
  %v42 = vrot.slane %v16, %v41
  %v43 = vlaneseq
  %v44 = vshrl.u32 %v43, 7
  %v45 = vsub.s32 1, %v44
  %v46 = vrot.slane %v16, %v45
  %v49 = vmul.f32 %v42, %v36
  %v50 = vmul.f32 %v46, %v37
  %v51 = vadd.f32 %v34, %v49
  %v52 = vadd.f32 %v35, %v50
  %v53 = vmul.f32 %v14, 2.0
  %v54 = vmul.f32 %v15, 2.0
  %v55 = vadd.f32 %v51, %v53
  %v56 = vadd.f32 %v52, %v54
  %57 = vrot.lane.b32.xlu0 %v55, 16
  %v58 = vpop.permute.xlu0 %57
  %59 = vrot.lane.b32.xlu0 %v56, 16
  %v60 = vpop.permute.xlu0 %59
  %vm61 = vcmp.lt.s32.totalorder %v23, 16
  %v62 = vsel %vm61, %v58, %v60
  %v63 = vsel %vm61, %v60, %v58
  %64 = vrot.lane.b32.xlu0 %v55, 112
  %v65 = vpop.permute.xlu0 %64
  %66 = vrot.lane.b32.xlu0 %v56, 112
  %v67 = vpop.permute.xlu0 %66
  %vm68 = vcmp.lt.s32.totalorder %v23, 112
  %v69 = vsel %vm68, %v65, %v67
  %v70 = vsel %vm68, %v67, %v65
  %v71 = vadd.f32 %v63, %v69
  %v72 = vadd.f32 %v62, %v70
  %v73 = vsub.f32 %v69, %v63
  %v74 = vsub.f32 %v70, %v62
  %v76 = vlaneseq
  %v77 = vshrl.u32 %v76, 7
  %v78 = vsub.s32 0, %v77
  %v79 = vrot.slane %v17, %v78
  %v80 = vlaneseq
  %v81 = vshrl.u32 %v80, 7
  %v82 = vsub.s32 1, %v81
  %v83 = vrot.slane %v17, %v82
  %v86 = vmul.f32 %v79, %v73
  %v87 = vmul.f32 %v83, %v74
  %v88 = vadd.f32 %v71, %v86
  %v89 = vadd.f32 %v72, %v87
  %v90 = vmul.f32 %v55, 2.0
  %v91 = vmul.f32 %v56, 2.0
  %v92 = vadd.f32 %v88, %v90
  %v93 = vadd.f32 %v89, %v91
  %v94 = vmul.f32 %v92, 0.0625
  %v95 = vmul.f32 %v93, 0.0625
  %96 = vst [vmem:[%s3] sm:$0xff] %v94
  %97 = vst [vmem:[%s3 + $0x8] sm:$0xff] %v95
  // Predicated region
  $region14: #{blur.1} parent=0 // pred_check
    _
  $region15: #{blur.1} parent=0 // pred_check_branch
    %99 = sbr.rel (0) target = $region17
  $region16: #{blur.1} parent=0 // pred_region
    _
  $region17: #{blur.1} parent=0 // pred_fallthru
    _
  // Predicated region
  $region18: #{blur.1} parent=0 // pred_check
    _
  $region19: #{blur.1} parent=0 // pred_check_branch
    %101 = sbr.rel (0) target = $region21
  $region20: #{blur.1} parent=0 // pred_region
    _
  $region21: #{blur.1} parent=0 // pred_fallthru
    _

</llo_original>
